<compile_context>
chip_gen: v7x
topology: tpu7x:2x2x1
jax: 0.10.0
libtpu: 0.0.40
codegen_flags: <defaults>
</compile_context>

<pallas_src>
import functools

import numpy as np
import jax
import jax.numpy as jnp
from jax.experimental import pallas as pl
from jax.experimental.pallas import tpu as pltpu

EPS = 1e-5                       # nn.BatchNorm2d default eps
VMEM_LIMIT = 64 * 1024 * 1024    # above v5e(16MiB)/v6e(32MiB) scoped defaults


def _num_stats_cores():
    """2 only on dual-TensorCore chips (v7x); v5e/v6e have a single TC."""
    try:
        kind = jax.devices()[0].device_kind.lower()
    except Exception:
        return 1
    return 2 if ("v7" in kind or "7x" in kind) else 1


def _interleave_matrix(H, W):
    """S[g, m, l] = 1 iff output spatial position l=(u,v) of the (2H, 2W) map
    takes its value from deconv plane g=2p+q at input position m=i*W+j,
    with u=2i+p, v=2j+q.  A 0/1 matrix, so the permutation matmul is exact."""
    HW = H * W
    L = 4 * HW
    l = np.arange(L)
    u, v = l // (2 * W), l % (2 * W)
    g = 2 * (u % 2) + (v % 2)
    m = (u // 2) * W + (v // 2)
    S = np.zeros((4, HW, L), np.float32)
    S[g, m, l] = 1.0
    return S


# ---------------------------------------------------------------------------
# Kernel 1: statistics only.  For one sample slab x (Cin, HW), compute
# y = Wm @ x (never stored to HBM) and accumulate per-row (row = g*Cout + co,
# g = 2p+q) shifted sums into per-core resident output blocks.
# ---------------------------------------------------------------------------
def _stats_kernel(x_ref, w_ref, mu_ref, s1_ref, s2_ref, *, n_valid):
    c = pl.program_id(0)
    k = pl.program_id(1)
    nh = pl.num_programs(1)
    s = c * nh + k

    @pl.when(k == 0)
    def _():
        mu_ref[...] = jnp.zeros_like(mu_ref)
        s1_ref[...] = jnp.zeros_like(s1_ref)
        s2_ref[...] = jnp.zeros_like(s2_ref)

    @pl.when(s < n_valid)                     # skip padded steps (odd N / core split)
    def _():
        y = jnp.dot(w_ref[...], x_ref[0], preferred_element_type=jnp.float32)  # (R, HW)

        @pl.when(k == 0)
        def _():
            # shift point: per-row mean of this core's first sample
            mu_ref[...] = jnp.mean(y, axis=1, keepdims=True)[None]

        d = y - mu_ref[0]
        s1_ref[...] += jnp.sum(d, axis=1, keepdims=True)[None]
        s2_ref[...] += jnp.sum(d * d, axis=1, keepdims=True)[None]


# ---------------------------------------------------------------------------
# Kernel 2: fused deconv (recomputed) + stride-2 interleave (via MXU scatter
# matmul) + BatchNorm apply + PReLU.  Output layout (N, Cout, 4*H*W) == NCHW
# flattened -> the final reshape in the wrapper is metadata-only.
# ---------------------------------------------------------------------------
def _apply_kernel(x_ref, w_ref, s_ref, p_ref, o_ref):
    x = x_ref[0]                                                      # (Cin, HW)
    acc = None
    for g in range(4):                                                # g = 2p + q
        zg = jnp.dot(w_ref[g], x, preferred_element_type=jnp.float32)       # (Cout, HW)
        og = jnp.dot(zg, s_ref[g], preferred_element_type=jnp.float32)      # (Cout, 4HW)
        acc = og if acc is None else acc + og
    scale, shift = p_ref[0], p_ref[1]                                 # (Cout, 1)
    ascale, ashift = p_ref[2], p_ref[3]                               # alpha*scale, alpha*shift
    pos = acc * scale + shift
    neg = acc * ascale + ashift                                       # == alpha * pos
    o_ref[...] = jnp.where(pos > 0, pos, neg)[None]


def deconv_block_forward(x_nchw, weight, gamma, beta, alpha, out=False):
    """weight: (Cin, Cout, 2, 2) — PyTorch ConvTranspose2d layout."""
    N, Cin, H, W = x_nchw.shape
    Cout = weight.shape[1]
    HW = H * W
    R = 4 * Cout

    # Free view: NCHW is already (N, Cin, H*W) contiguous.
    x3 = x_nchw.reshape(N, Cin, HW)
    # w4[g, co, ci] = weight[ci, co, p, q] with g = 2p + q
    w4 = jnp.transpose(weight, (2, 3, 1, 0)).reshape(4, Cout, Cin).astype(jnp.float32)
    wm = w4.reshape(R, Cin)                                   # rows ordered (g, co)
    S = jnp.asarray(_interleave_matrix(H, W))                 # (4, HW, 4HW), constant

    if out:
        # deconv only: identity BN, identity PReLU
        ones = jnp.ones((Cout,), jnp.float32)
        zeros = jnp.zeros((Cout,), jnp.float32)
        params = jnp.stack([ones, zeros, ones, zeros], axis=0).reshape(4, Cout, 1)
    else:
        # -------- pass 1: batch statistics (reads only x, tiny outputs) -----
        NC = _num_stats_cores()
        nh = -(-N // NC)

        mu, s1, s2 = pl.pallas_call(
            functools.partial(_stats_kernel, n_valid=N),
            out_shape=(jax.ShapeDtypeStruct((NC, R, 1), jnp.float32),) * 3,
            grid_spec=pltpu.PrefetchScalarGridSpec(
                num_scalar_prefetch=0,
                grid=(NC, nh),
                in_specs=[
                    # clamp so padded steps still point at a valid block
                    pl.BlockSpec((1, Cin, HW),
                                 lambda c, k: (jnp.minimum(c * nh + k, N - 1), 0, 0)),
                    pl.BlockSpec((R, Cin), lambda c, k: (0, 0)),
                ],
                out_specs=(pl.BlockSpec((1, R, 1), lambda c, k: (c, 0, 0)),) * 3),
            compiler_params=pltpu.CompilerParams(
                dimension_semantics=("parallel", "arbitrary"),
                vmem_limit_bytes=VMEM_LIMIT),
        )(x3, wm)

        # -------- tiny JAX glue: pooled mean/var over (core, p, q) groups ----
        n_samp = np.clip(N - np.arange(NC) * nh, 0, nh).astype(np.float32)
        cnt = jnp.asarray(n_samp) * float(HW)                 # elems per row per core
        cnt_safe = jnp.maximum(cnt, 1.0)
        mu2, s1_2, s2_2 = mu[..., 0], s1[..., 0], s2[..., 0]  # (NC, R)
        d1 = s1_2 / cnt_safe[:, None]
        mean_cr = mu2 + d1                                    # shifted mean -> true mean
        var_cr = jnp.maximum(s2_2 / cnt_safe[:, None] - d1 * d1, 0.0)
        mean_g = mean_cr.reshape(NC, 4, Cout)
        var_g = var_cr.reshape(NC, 4, Cout)
        w_g = (cnt / (4.0 * jnp.maximum(jnp.sum(cnt), 1.0)))[:, None, None]
        mean_c = jnp.sum(w_g * mean_g, axis=(0, 1))                              # (Cout,)
        var_c = jnp.sum(w_g * (var_g + (mean_g - mean_c) ** 2), axis=(0, 1))     # biased
        scale_c = (gamma / jnp.sqrt(var_c + EPS)).astype(jnp.float32)
        shift_c = (beta - mean_c * scale_c).astype(jnp.float32)
        a = jnp.float32(alpha)
        params = jnp.stack([scale_c, shift_c, a * scale_c, a * shift_c],
                           axis=0).reshape(4, Cout, 1)

    # -------- pass 2: fused deconv + interleave + BN apply + PReLU -----------
    zf = pl.pallas_call(
        _apply_kernel,
        out_shape=jax.ShapeDtypeStruct((N, Cout, 4 * HW), jnp.float32),
        grid_spec=pltpu.PrefetchScalarGridSpec(
            num_scalar_prefetch=0,
            grid=(N,),
            in_specs=[
                pl.BlockSpec((1, Cin, HW), lambda n: (n, 0, 0)),
                pl.BlockSpec((4, Cout, Cin), lambda n: (0, 0, 0)),
                pl.BlockSpec((4, HW, 4 * HW), lambda n: (0, 0, 0)),   # fetched once
                pl.BlockSpec((4, Cout, 1), lambda n: (0, 0, 0)),
            ],
            out_specs=pl.BlockSpec((1, Cout, 4 * HW), lambda n: (n, 0, 0))),
        compiler_params=pltpu.CompilerParams(
            dimension_semantics=("parallel",),
            vmem_limit_bytes=VMEM_LIMIT),
    )(x3, w4, S, params)

    # Metadata-only reshape: (N, Cout, 4HW) is already flattened NCHW.
    return zf.reshape(N, Cout, 2 * H, 2 * W)


# ---------------------------------------------------------------------------
# Pure-JAX reference (matches PyTorch training-mode forward semantics)
# ---------------------------------------------------------------------------
def ref_forward(x_nchw, weight, gamma, beta, alpha, out=False):
    N, Cin, H, W = x_nchw.shape
    Cout = weight.shape[1]
    # out[n, co, 2i+p, 2j+q] = sum_ci x[n, ci, i, j] * W[ci, co, p, q]
    y = jnp.einsum('ncij,copq->noipjq', x_nchw, weight,
                   precision=jax.lax.Precision.HIGHEST)
    y = y.reshape(N, Cout, 2 * H, 2 * W)
    if out:
        return y
    mean = y.mean(axis=(0, 2, 3), keepdims=True)
    var = ((y - mean) ** 2).mean(axis=(0, 2, 3), keepdims=True)   # biased
    z = (y - mean) / jnp.sqrt(var + EPS)
    z = z * gamma.reshape(1, -1, 1, 1) + beta.reshape(1, -1, 1, 1)
    return jnp.where(z > 0, z, alpha * z)


if __name__ == "__main__":
    key = jax.random.PRNGKey(0)
    kx, kw = jax.random.split(key)

    N, Cin, H, W, Cout = 2, 4, 16, 16, 8       # H*W = 256, 4*H*W = 1024 (lane-dense)
    x = jax.random.normal(kx, (N, Cin, H, W), jnp.float32)

    # ConvTranspose2d weight (in, out, 2, 2), kaiming_normal-style deterministic init
    fan_in = Cout * 2 * 2
    weight = jax.random.normal(kw, (Cin, Cout, 2, 2), jnp.float32) * jnp.sqrt(2.0 / fan_in)
    gamma = jnp.ones((Cout,), jnp.float32)     # init_bn: weight = 1
    beta = jnp.zeros((Cout,), jnp.float32)     # init_bn: bias = 0
    alpha = jnp.float32(0.25)                  # nn.PReLU() default

    out_full = deconv_block_forward(x, weight, gamma, beta, alpha, out=False)
    out_deconv = deconv_block_forward(x, weight, gamma, beta, alpha, out=True)
    jax.block_until_ready((out_full, out_deconv))

    ref_full = ref_forward(x, weight, gamma, beta, alpha, out=False)
    ref_deconv = ref_forward(x, weight, gamma, beta, alpha, out=True)
    jax.block_until_ready((ref_full, ref_deconv))

    assert out_full.shape == (N, Cout, 2 * H, 2 * W)
    np.testing.assert_allclose(np.asarray(out_deconv), np.asarray(ref_deconv),
                               rtol=2e-3, atol=2e-3)
    np.testing.assert_allclose(np.asarray(out_full), np.asarray(ref_full),
                               rtol=2e-3, atol=2e-3)
    print("KERNEL_OK")
</pallas_src>

<mosaic_0001>
module attributes {stable_mosaic.version = 11 : i64} {
  func.func @_stats_kernel(%arg0: i32, %arg1: i32, %arg2: memref<1x4x256xf32, #tpu.memory_space<vmem>>, %arg3: memref<32x4xf32, #tpu.memory_space<vmem>>, %arg4: memref<1x32x1xf32, #tpu.memory_space<vmem>>, %arg5: memref<1x32x1xf32, #tpu.memory_space<vmem>>, %arg6: memref<1x32x1xf32, #tpu.memory_space<vmem>>) attributes {dimension_semantics = [#tpu.dimension_semantics<parallel>, #tpu.dimension_semantics<arbitrary>], iteration_bounds = array<i64: 1, 2>, scalar_prefetch = 0 : i64, scratch_operands = 0 : i64, tpu.core_type = #tpu.core_type<tc>, window_params = [{transform_indices = @transform_0, window_bounds = array<i64: 1, 4, 256>}, {pipeline_mode = #tpu.pipeline_mode<synchronous>, transform_indices = @transform_1, window_bounds = array<i64: 32, 4>}, {transform_indices = @transform_2, window_bounds = array<i64: 1, 32, 1>}, {transform_indices = @transform_3, window_bounds = array<i64: 1, 32, 1>}, {transform_indices = @transform_4, window_bounds = array<i64: 1, 32, 1>}]} {
    %c2_i32 = arith.constant 2 : i32
    %0 = arith.muli %arg0, %c2_i32 : i32
    %1 = arith.addi %0, %arg1 : i32
    %c0_i32 = arith.constant 0 : i32
    %2 = arith.cmpi eq, %arg1, %c0_i32 : i32
    %3 = arith.extui %2 : i1 to i32
    %c0_i32_0 = arith.constant 0 : i32
    %4 = arith.cmpi ne, %3, %c0_i32_0 : i32
    scf.if %4 {
      %cst = arith.constant 0.000000e+00 : f32
      %8 = vector.broadcast %cst : f32 to vector<1x32x1xf32>
      %c0 = arith.constant 0 : index
      %c0_3 = arith.constant 0 : index
      %c0_4 = arith.constant 0 : index
      %9 = vector.load %arg4[%c0, %c0_3, %c0_4] : memref<1x32x1xf32, #tpu.memory_space<vmem>>, vector<1x32x1xf32>
      tpu.vector_store %arg4[%c0, %c0_3, %c0_4], %8 {strides = array<i32>} : memref<1x32x1xf32, #tpu.memory_space<vmem>>, vector<1x32x1xf32>,
      %cst_5 = arith.constant 0.000000e+00 : f32
      %10 = vector.broadcast %cst_5 : f32 to vector<1x32x1xf32>
      %c0_6 = arith.constant 0 : index
      %c0_7 = arith.constant 0 : index
      %c0_8 = arith.constant 0 : index
      %11 = vector.load %arg5[%c0_6, %c0_7, %c0_8] : memref<1x32x1xf32, #tpu.memory_space<vmem>>, vector<1x32x1xf32>
      tpu.vector_store %arg5[%c0_6, %c0_7, %c0_8], %10 {strides = array<i32>} : memref<1x32x1xf32, #tpu.memory_space<vmem>>, vector<1x32x1xf32>,
      %cst_9 = arith.constant 0.000000e+00 : f32
      %12 = vector.broadcast %cst_9 : f32 to vector<1x32x1xf32>
      %c0_10 = arith.constant 0 : index
      %c0_11 = arith.constant 0 : index
      %c0_12 = arith.constant 0 : index
      %13 = vector.load %arg6[%c0_10, %c0_11, %c0_12] : memref<1x32x1xf32, #tpu.memory_space<vmem>>, vector<1x32x1xf32>
      tpu.vector_store %arg6[%c0_10, %c0_11, %c0_12], %12 {strides = array<i32>} : memref<1x32x1xf32, #tpu.memory_space<vmem>>, vector<1x32x1xf32>,
    } else {
    }
    %c2_i32_1 = arith.constant 2 : i32
    %5 = arith.cmpi slt, %1, %c2_i32_1 : i32
    %6 = arith.extui %5 : i1 to i32
    %c0_i32_2 = arith.constant 0 : i32
    %7 = arith.cmpi ne, %6, %c0_i32_2 : i32
    scf.if %7 {
      %c0 = arith.constant 0 : index
      %c0_3 = arith.constant 0 : index
      %8 = vector.load %arg3[%c0, %c0_3] : memref<32x4xf32, #tpu.memory_space<vmem>>, vector<32x4xf32>
      %c0_4 = arith.constant 0 : index
      %c0_5 = arith.constant 0 : index
      %c0_6 = arith.constant 0 : index
      %9 = vector.load %arg2[%c0_4, %c0_5, %c0_6] : memref<1x4x256xf32, #tpu.memory_space<vmem>>, vector<1x4x256xf32>
      %10 = vector.shape_cast %9 : vector<1x4x256xf32> to vector<4x256xf32>
      %cst = arith.constant dense<0.000000e+00> : vector<32x256xf32>
      %11 = tpu.matmul %8, %10, %cst {dimension_numbers = #tpu.dot_dimension_numbers<[1], [0], [0], [1], [0, 0, 1, 1], [], []>} : vector<32x4xf32>, vector<4x256xf32>, vector<32x256xf32> -> vector<32x256xf32>
      %c0_i32_7 = arith.constant 0 : i32
      %12 = arith.cmpi eq, %arg1, %c0_i32_7 : i32
      %13 = arith.extui %12 : i1 to i32
      %c0_i32_8 = arith.constant 0 : i32
      %14 = arith.cmpi ne, %13, %c0_i32_8 : i32
      scf.if %14 {
        %cst_26 = arith.constant dense<0.000000e+00> : vector<32xf32>
        %32 = vector.multi_reduction <add>, %11, %cst_26 [1] : vector<32x256xf32> to vector<32xf32>
        %33 = vector.shape_cast %32 : vector<32xf32> to vector<32x1xf32>
        %cst_27 = arith.constant 2.560000e+02 : f32
        %34 = vector.broadcast %cst_27 : f32 to vector<32x1xf32>
        %35 = arith.divf %33, %34 : vector<32x1xf32>
        %36 = vector.shape_cast %35 : vector<32x1xf32> to vector<1x32x1xf32>
        %c0_28 = arith.constant 0 : index
        %c0_29 = arith.constant 0 : index
        %c0_30 = arith.constant 0 : index
        %37 = vector.load %arg4[%c0_28, %c0_29, %c0_30] : memref<1x32x1xf32, #tpu.memory_space<vmem>>, vector<1x32x1xf32>
        tpu.vector_store %arg4[%c0_28, %c0_29, %c0_30], %36 {strides = array<i32>} : memref<1x32x1xf32, #tpu.memory_space<vmem>>, vector<1x32x1xf32>,
      } else {
      }
      %c0_9 = arith.constant 0 : index
      %c0_10 = arith.constant 0 : index
      %c0_11 = arith.constant 0 : index
      %15 = vector.load %arg4[%c0_9, %c0_10, %c0_11] : memref<1x32x1xf32, #tpu.memory_space<vmem>>, vector<1x32x1xf32>
      %16 = vector.shape_cast %15 : vector<1x32x1xf32> to vector<32x1xf32>
      %17 = vector.broadcast %16 : vector<32x1xf32> to vector<32x256xf32>
      %18 = arith.subf %11, %17 : vector<32x256xf32>
      %c0_12 = arith.constant 0 : index
      %c0_13 = arith.constant 0 : index
      %c0_14 = arith.constant 0 : index
      %19 = vector.load %arg5[%c0_12, %c0_13, %c0_14] : memref<1x32x1xf32, #tpu.memory_space<vmem>>, vector<1x32x1xf32>
      %cst_15 = arith.constant dense<0.000000e+00> : vector<32xf32>
      %20 = vector.multi_reduction <add>, %18, %cst_15 [1] : vector<32x256xf32> to vector<32xf32>
      %21 = vector.shape_cast %20 : vector<32xf32> to vector<32x1xf32>
      %22 = vector.shape_cast %21 : vector<32x1xf32> to vector<1x32x1xf32>
      %23 = arith.addf %19, %22 : vector<1x32x1xf32>
      %c0_16 = arith.constant 0 : index
      %c0_17 = arith.constant 0 : index
      %c0_18 = arith.constant 0 : index
      %24 = vector.load %arg5[%c0_16, %c0_17, %c0_18] : memref<1x32x1xf32, #tpu.memory_space<vmem>>, vector<1x32x1xf32>
      tpu.vector_store %arg5[%c0_16, %c0_17, %c0_18], %23 {strides = array<i32>} : memref<1x32x1xf32, #tpu.memory_space<vmem>>, vector<1x32x1xf32>,
      %c0_19 = arith.constant 0 : index
      %c0_20 = arith.constant 0 : index
      %c0_21 = arith.constant 0 : index
      %25 = vector.load %arg6[%c0_19, %c0_20, %c0_21] : memref<1x32x1xf32, #tpu.memory_space<vmem>>, vector<1x32x1xf32>
      %26 = arith.mulf %18, %18 : vector<32x256xf32>
      %cst_22 = arith.constant dense<0.000000e+00> : vector<32xf32>
      %27 = vector.multi_reduction <add>, %26, %cst_22 [1] : vector<32x256xf32> to vector<32xf32>
      %28 = vector.shape_cast %27 : vector<32xf32> to vector<32x1xf32>
      %29 = vector.shape_cast %28 : vector<32x1xf32> to vector<1x32x1xf32>
      %30 = arith.addf %25, %29 : vector<1x32x1xf32>
      %c0_23 = arith.constant 0 : index
      %c0_24 = arith.constant 0 : index
      %c0_25 = arith.constant 0 : index
      %31 = vector.load %arg6[%c0_23, %c0_24, %c0_25] : memref<1x32x1xf32, #tpu.memory_space<vmem>>, vector<1x32x1xf32>
      tpu.vector_store %arg6[%c0_23, %c0_24, %c0_25], %30 {strides = array<i32>} : memref<1x32x1xf32, #tpu.memory_space<vmem>>, vector<1x32x1xf32>,
    } else {
    }
    return
  }
  func.func @transform_0(%arg0: i32, %arg1: i32) -> (i32, i32, i32) {
    %c2_i32 = arith.constant 2 : i32
    %0 = arith.muli %arg0, %c2_i32 : i32
    %1 = arith.addi %0, %arg1 : i32
    %c1_i32 = arith.constant 1 : i32
    %2 = arith.minsi %1, %c1_i32 : i32
    %c0_i32 = arith.constant 0 : i32
    %c0_i32_0 = arith.constant 0 : i32
    %c0_i32_1 = arith.constant 0 : i32
    return %2, %c0_i32, %c0_i32_0 : i32, i32, i32
  }
  func.func @transform_1(%arg0: i32, %arg1: i32) -> (i32, i32) {
    %c0_i32 = arith.constant 0 : i32
    %c0_i32_0 = arith.constant 0 : i32
    %c0_i32_1 = arith.constant 0 : i32
    return %c0_i32, %c0_i32_0 : i32, i32
  }
  func.func @transform_2(%arg0: i32, %arg1: i32) -> (i32, i32, i32) {
    %c0_i32 = arith.constant 0 : i32
    %c0_i32_0 = arith.constant 0 : i32
    %c0_i32_1 = arith.constant 0 : i32
    return %arg0, %c0_i32, %c0_i32_0 : i32, i32, i32
  }
  func.func @transform_3(%arg0: i32, %arg1: i32) -> (i32, i32, i32) {
    %c0_i32 = arith.constant 0 : i32
    %c0_i32_0 = arith.constant 0 : i32
    %c0_i32_1 = arith.constant 0 : i32
    return %arg0, %c0_i32, %c0_i32_0 : i32, i32, i32
  }
  func.func @transform_4(%arg0: i32, %arg1: i32) -> (i32, i32, i32) {
    %c0_i32 = arith.constant 0 : i32
    %c0_i32_0 = arith.constant 0 : i32
    %c0_i32_1 = arith.constant 0 : i32
    return %arg0, %c0_i32, %c0_i32_0 : i32, i32, i32
  }
}

</mosaic_0001>

<llo_original>
// kernel: tpu_custom_call.1
$region0: #{tpu_custom_call.1}
  #allocation0 [shape = 'u32[]', space=smem, size = 0x4, offset = 0x4, fixed_abs, tag = 'smem constant byte address 0x4 - core index']
  #allocation1 [shape = 'u32[144,128]{1,0:T(1,128)}', space=vmem, size = 0x12000, scoped, tag = 'internal scratch']
  %s0 = inlined_call_operand.hbm [shape: f32[2,4,256], index: 0, kind: input, shape index: {}]
  %s1 = inlined_call_operand.hbm [shape: f32[32,4], index: 1, kind: input, shape index: {}]
  %s2 = inlined_call_operand.hbm [shape: f32[1,32,1], index: 2, kind: output, shape index: {0}]
  %s3 = inlined_call_operand.hbm [shape: f32[1,32,1], index: 3, kind: output, shape index: {1}]
  %s4 = inlined_call_operand.hbm [shape: f32[1,32,1], index: 4, kind: output, shape index: {2}]
  %5 = xla_tuple %s2, %s3, %s4
  %s6 = sld [smem:[#allocation0]]
  $region77: #{tpu_custom_call.1} parent=0
    _
  %s8 = ssub.s32 1, %s6
  %s9 = scalar_select 0, %s8, %s6
  $region1: #{tpu_custom_call.1} parent=0
    #allocation2 [shape = 'u8[8192]{0}', space=vmem, size = 0x2000, scoped, tag = 'input window, operand 0']
    #allocation3 [shape = 's32[2]{0}', space=sflag, size = 0x8, scoped, tag = 'scoped memory for tpu_custom_call.1']
    #allocation4 [shape = 's32[2]{0}', space=sflag, size = 0x8, scoped, tag = 'scoped memory for tpu_custom_call.1']
    #allocation5 [shape = 'u8[16384]{0}', space=vmem, size = 0x4000, scoped, tag = 'input window, operand 1, single buffered']
    #allocation6 [shape = 's32[1]{0}', space=sflag, size = 0x4, scoped, tag = 'scoped memory for tpu_custom_call.1']
    #allocation7 [shape = 'u8[16384]{0}', space=vmem, size = 0x4000, scoped, tag = 'output window, operand 0, single buffered']
    #allocation8 [shape = 'u8[16384]{0}', space=vmem, size = 0x4000, scoped, tag = 'output window, operand 1, single buffered']
    #allocation9 [shape = 's32[1]{0}', space=sflag, size = 0x4, scoped, tag = 'scoped memory for tpu_custom_call.1']
    #allocation10 [shape = 'u8[16384]{0}', space=vmem, size = 0x4000, scoped, tag = 'output window, operand 2, single buffered']
    %10 = vsyncpa [#allocation3], 0
    %s11 = scalar_lea.sflag [#allocation3], 1
    %12 = vsyncpa %s11, 0
    %13 = vsyncpa [#allocation6], 0
    %14 = vsyncpa [#allocation4], 0
    %15 = vsyncpa [#allocation9], 0
    loop: start=0, step=1, limit=4
    $region2: #{tpu_custom_call.1} parent=1 // loop_pre_header
      _
    $region3: #{tpu_custom_call.1} parent=1 // loop_header
      %s17 = sphi 0, %s21
      %p18 = scmp.ge.s32.totalorder %s17, 4
      %s24 = sphi 0, %s36
      %s25 = sphi 0, %s32
      %s26 = sphi 0, %s24
      %s27 = sphi 0, %s25
      %s28 = sphi 0, %s26
      %s29 = sphi 0, %s27
      %s47 = sphi 0, %s49
      %s50 = sphi 0, %s47
      %s51 = sphi 0, %s50
      %s67 = sphi 0, %s51
      %s71 = sphi 0, %s71
      %s73 = sphi 0, %s71
      %s74 = sphi 0, %s73
      %s88 = sphi 0, %s74
      %s94 = sphi 0, %s96
      %s97 = sphi 0, %s94
      %s98 = sphi 0, %s97
      %s114 = sphi 0, %s98
      %s120 = sphi 0, %s122
      %s123 = sphi 0, %s120
      %s124 = sphi 0, %s123
      %s140 = sphi 0, %s124
      %s146 = sphi 0, %s148
      %s149 = sphi 0, %s146
      %s150 = sphi 0, %s149
      %s166 = sphi 0, %s150
    $region4: #{tpu_custom_call.1} parent=1 // loop_header_branch
      %20 = sbr.rel (%p18) target = $region8
    $region5: #{tpu_custom_call.1} parent=1 // loop_body
      %s22 = ssub.s32 %s17, 1
      %s23 = ssub.s32 %s17, 2
      %s30 = sadd.s32 1, %s25
      %p31 = scmp.ge.s32.totalorder %s30, 2
      %s32 = scalar_select %p31, 0, %s30
      %s33 = sadd.s32 1, %s24
      %s34 = scalar_select %p31, %s33, %s24
      %p35 = scmp.ge.s32.totalorder %s34, 1
      %s36 = scalar_select %p35, 0, %s34
      %s37 = smul.u32 %s24, 2
      %s38 = sadd.s32 %s37, %s25
      %p39 = scmp.lt.s32.totalorder %s38, 1
      %s40 = scalar_select %p39, %s38, 1
      %s41 = smul.u32 %s36, 2
      %s42 = sadd.s32 %s41, %s32
      %p43 = scmp.lt.s32.totalorder %s42, 1
      %s44 = scalar_select %p43, %s42, 1
      %s45 = ssub.s32 %s40, %s44
      %p46 = scmp.eq.s32.totalorder %s45, 0
      %s48 = sadd.s32 %s47, 1
      %s49 = scalar_select %p46, %s47, %s48
      %p52 = pneg %p46
      %p53 = scmp.eq.s32.totalorder %s17, 1
      %p54 = por %p52, %p53
      %p55 = scmp.ne.s32.totalorder %s47, %s50
      %p56 = scmp.eq.s32.totalorder %s17, 0
      %p57 = por %p55, %p56
      %p58 = scmp.ne.s32.totalorder %s47, %s50
      %p59 = scmp.eq.s32.totalorder %s22, 1
      %p60 = por %p58, %p59
      %p61 = scmp.ne.s32.totalorder %s50, %s51
      %p62 = scmp.eq.s32.totalorder %s22, 0
      %p63 = por %p61, %p62
      %p64 = scmp.ne.s32.totalorder %s50, %s51
      %p65 = scmp.eq.s32.totalorder %s23, 1
      %p66 = por %p64, %p65
      %p68 = scmp.ne.s32.totalorder %s51, %s67
      %p69 = scmp.eq.s32.totalorder %s23, 0
      %p70 = por %p68, %p69
      %s72 = sadd.s32 %s71, 1
      %p75 = scmp.eq.s32.totalorder %s17, 1
      %p76 = scmp.ne.s32.totalorder %s71, %s73
      %p77 = scmp.eq.s32.totalorder %s17, 0
      %p78 = por %p76, %p77
      %p79 = scmp.ne.s32.totalorder %s71, %s73
      %p80 = scmp.eq.s32.totalorder %s22, 1
      %p81 = por %p79, %p80
      %p82 = scmp.ne.s32.totalorder %s73, %s74
      %p83 = scmp.eq.s32.totalorder %s22, 0
      %p84 = por %p82, %p83
      %p85 = scmp.ne.s32.totalorder %s73, %s74
      %p86 = scmp.eq.s32.totalorder %s23, 1
      %p87 = por %p85, %p86
      %p89 = scmp.ne.s32.totalorder %s74, %s88
      %p90 = scmp.eq.s32.totalorder %s23, 0
      %p91 = por %p89, %p90
      %s92 = ssub.s32 %s24, %s36
      %p93 = scmp.eq.s32.totalorder %s92, 0
      %s95 = sadd.s32 %s94, 1
      %s96 = scalar_select %p93, %s94, %s95
      %p99 = pneg %p93
      %p100 = scmp.eq.s32.totalorder %s17, 1
      %p101 = por %p99, %p100
      %p102 = scmp.ne.s32.totalorder %s94, %s97
      %p103 = scmp.eq.s32.totalorder %s17, 0
      %p104 = por %p102, %p103
      %p105 = scmp.ne.s32.totalorder %s94, %s97
      %p106 = scmp.eq.s32.totalorder %s22, 1
      %p107 = por %p105, %p106
      %p108 = scmp.ne.s32.totalorder %s97, %s98
      %p109 = scmp.eq.s32.totalorder %s22, 0
      %p110 = por %p108, %p109
      %p111 = scmp.ne.s32.totalorder %s97, %s98
      %p112 = scmp.eq.s32.totalorder %s23, 1
      %p113 = por %p111, %p112
      %p115 = scmp.ne.s32.totalorder %s98, %s114
      %p116 = scmp.eq.s32.totalorder %s23, 0
      %p117 = por %p115, %p116
      %s118 = ssub.s32 %s24, %s36
      %p119 = scmp.eq.s32.totalorder %s118, 0
      %s121 = sadd.s32 %s120, 1
      %s122 = scalar_select %p119, %s120, %s121
      %p125 = pneg %p119
      %p126 = scmp.eq.s32.totalorder %s17, 1
      %p127 = por %p125, %p126
      %p128 = scmp.ne.s32.totalorder %s120, %s123
      %p129 = scmp.eq.s32.totalorder %s17, 0
      %p130 = por %p128, %p129
      %p131 = scmp.ne.s32.totalorder %s120, %s123
      %p132 = scmp.eq.s32.totalorder %s22, 1
      %p133 = por %p131, %p132
      %p134 = scmp.ne.s32.totalorder %s123, %s124
      %p135 = scmp.eq.s32.totalorder %s22, 0
      %p136 = por %p134, %p135
      %p137 = scmp.ne.s32.totalorder %s123, %s124
      %p138 = scmp.eq.s32.totalorder %s23, 1
      %p139 = por %p137, %p138
      %p141 = scmp.ne.s32.totalorder %s124, %s140
      %p142 = scmp.eq.s32.totalorder %s23, 0
      %p143 = por %p141, %p142
      %s144 = ssub.s32 %s24, %s36
      %p145 = scmp.eq.s32.totalorder %s144, 0
      %s147 = sadd.s32 %s146, 1
      %s148 = scalar_select %p145, %s146, %s147
      %p151 = pneg %p145
      %p152 = scmp.eq.s32.totalorder %s17, 1
      %p153 = por %p151, %p152
      %p154 = scmp.ne.s32.totalorder %s146, %s149
      %p155 = scmp.eq.s32.totalorder %s17, 0
      %p156 = por %p154, %p155
      %p157 = scmp.ne.s32.totalorder %s146, %s149
      %p158 = scmp.eq.s32.totalorder %s22, 1
      %p159 = por %p157, %p158
      %p160 = scmp.ne.s32.totalorder %s149, %s150
      %p161 = scmp.eq.s32.totalorder %s22, 0
      %p162 = por %p160, %p161
      %p163 = scmp.ne.s32.totalorder %s149, %s150
      %p164 = scmp.eq.s32.totalorder %s23, 1
      %p165 = por %p163, %p164
      %p167 = scmp.ne.s32.totalorder %s150, %s166
      %p168 = scmp.eq.s32.totalorder %s23, 0
      %p169 = por %p167, %p168
      %p170 = scmp.le.s32.totalorder 1, %s17
      %p171 = scmp.lt.s32.totalorder %s17, 3
      %p172 = pnand %p170, %p171
      %p173 = pneg %p172
      // Predicated region
      $region9: #{tpu_custom_call.1} parent=5 // pred_check
        _
      $region10: #{tpu_custom_call.1} parent=5 // pred_check_branch
        %175 = sbr.rel (%p172) target = $region12
      $region11: #{tpu_custom_call.1} parent=5 // pred_region
        %s176 = ssub.s32 %s17, 1
        // Predicated region
        $region13: #{tpu_custom_call.1} parent=11 // pred_check
          %p177 = pneg %p84
        $region14: #{tpu_custom_call.1} parent=11 // pred_check_branch
          %179 = sbr.rel (%p177) target = $region16
        $region15: #{tpu_custom_call.1} parent=11 // pred_region
          %s181 = ssub.s32 512, 512
          %182 = vsyncadd [#allocation6], %s181
          %s183 = sshll.u32 [#allocation5], 4
          %s184 = int_to_ptr.vmem [resolvable:$true] %s183
          %189 = dma.hbm_to_vmem [thread:$0]  %s1, 512, %s184, [#allocation6], 128, 128, 8
        $region16: #{tpu_custom_call.1} parent=11 // pred_fallthru
          _
      $region12: #{tpu_custom_call.1} parent=5 // pred_fallthru
        _
      %p190 = scmp.lt.s32.totalorder %s17, 2
      // Predicated region
      $region17: #{tpu_custom_call.1} parent=5 // pred_check
        %p191 = pneg %p190
      $region18: #{tpu_custom_call.1} parent=5 // pred_check_branch
        %193 = sbr.rel (%p191) target = $region20
      $region19: #{tpu_custom_call.1} parent=5 // pred_region
        // Predicated region
        $region21: #{tpu_custom_call.1} parent=19 // pred_check
          %p194 = pneg %p57
        $region22: #{tpu_custom_call.1} parent=19 // pred_check_branch
          %196 = sbr.rel (%p194) target = $region24
        $region23: #{tpu_custom_call.1} parent=19 // pred_region
          %s197 = sand.u32 %s47, 1
          %s198 = scalar_lea.sflag [#allocation3], %s197
          %s199 = sand.u32 %s47, 1
          %s200 = smul.addr %s199, 8
          %s201 = scalar_lea.vmem [#allocation2], %s200
          %s202 = smul.u32 %s24, 2
          %s203 = sadd.s32 %s202, %s25
          %p204 = scmp.lt.s32.totalorder %s203, 1
          %s205 = scalar_select %p204, %s203, 1
          %s207 = ssub.s32 128, 128
          %208 = vsyncadd %s198, %s207
          %s209 = smul.addr %s205, 2
          %s210 = smul.addr %s209, 64
          %s211 = scalar_lea.hbm %s0, %s210
          %s213 = sshll.u32 %s201, 4
          %s214 = int_to_ptr.vmem [resolvable:$true] %s213
          %216 = dma.hbm_to_vmem [thread:$0]  %s211, 128, %s214, %s198
        $region24: #{tpu_custom_call.1} parent=19 // pred_fallthru
          _
      $region20: #{tpu_custom_call.1} parent=5 // pred_fallthru
        _
      %p217 = scmp.le.s32.totalorder 1, %s17
      %p218 = scmp.lt.s32.totalorder %s17, 3
      %p219 = pnand %p217, %p218
      %p220 = pneg %p219
      // Predicated region
      $region25: #{tpu_custom_call.1} parent=5 // pred_check
        _
      $region26: #{tpu_custom_call.1} parent=5 // pred_check_branch
        %222 = sbr.rel (%p219) target = $region28
      $region27: #{tpu_custom_call.1} parent=5 // pred_region
        %s223 = ssub.s32 %s17, 1
        %s224 = sand.u32 %s50, 1
        %s225 = scalar_lea.sflag [#allocation3], %s224
        %s226 = sand.u32 %s50, 1
        %s227 = smul.addr %s226, 8
        %s228 = scalar_lea.vmem [#allocation2], %s227
        // Predicated region
        $region29: #{tpu_custom_call.1} parent=27 // pred_check
          %p229 = pneg %p63
        $region30: #{tpu_custom_call.1} parent=27 // pred_check_branch
          %231 = sbr.rel (%p229) target = $region32
        $region31: #{tpu_custom_call.1} parent=27 // pred_region
          %232 = dma.done %s225, 128
        $region32: #{tpu_custom_call.1} parent=27 // pred_fallthru
          _
        // Predicated region
        $region33: #{tpu_custom_call.1} parent=27 // pred_check
          %p233 = pneg %p84
        $region34: #{tpu_custom_call.1} parent=27 // pred_check_branch
          %235 = sbr.rel (%p233) target = $region36
        $region35: #{tpu_custom_call.1} parent=27 // pred_region
          %236 = dma.done [#allocation6], 512
        $region36: #{tpu_custom_call.1} parent=27 // pred_fallthru
          _
        %s237 = sand.u32 %s50, 1
        %s238 = scalar_lea.sflag [#allocation3], %s237
        %s239 = sand.u32 %s50, 1
        %s240 = smul.addr %s239, 8
        %s241 = scalar_lea.vmem [#allocation2], %s240
        %p242 = pneg %p63
        %p243 = pneg %p60
        %p244 = pneg %p84
        %p245 = pneg %p81
        %p246 = pneg %p110
        %p247 = pneg %p107
        %p248 = pneg %p136
        %p249 = pneg %p133
        %p250 = pneg %p162
        %p251 = pneg %p159
        %s252 = smul.u32 %s26, 2
        %s253 = sadd.s32 %s252, %s27
        %p254 = scmp.lt.s32.totalorder %s253, 1
        %s255 = scalar_select %p254, %s253, 1
        %s256 = smul.u32 %s26, 2
        %s257 = sadd.s32 %s256, %s27
        %p258 = scmp.eq.s32.totalorder %s27, 0
        // Predicated region
        $region37: #{tpu_custom_call.1} parent=27 // pred_check
          %p259 = pneg %p258
        $region38: #{tpu_custom_call.1} parent=27 // pred_check_branch
          %261 = sbr.rel (%p259) target = $region40
        $region39: #{tpu_custom_call.1} parent=27 // pred_region
          %vm262 = vcmask 7168
          %263 = vst.msk [vmem:[#allocation7] sm:$0xff] %vm262, 0.0
          %264 = vst.msk [vmem:[#allocation7 + $0x8] sm:$0xff] %vm262, 0.0
          %265 = vst.msk [vmem:[#allocation7 + $0x10] sm:$0xff] %vm262, 0.0
          %266 = vst.msk [vmem:[#allocation7 + $0x18] sm:$0xff] %vm262, 0.0
          %267 = vst.msk [vmem:[#allocation8] sm:$0xff] %vm262, 0.0
          %268 = vst.msk [vmem:[#allocation8 + $0x8] sm:$0xff] %vm262, 0.0
          %269 = vst.msk [vmem:[#allocation8 + $0x10] sm:$0xff] %vm262, 0.0
          %270 = vst.msk [vmem:[#allocation8 + $0x18] sm:$0xff] %vm262, 0.0
          %271 = vst.msk [vmem:[#allocation10] sm:$0xff] %vm262, 0.0
          %272 = vst.msk [vmem:[#allocation10 + $0x8] sm:$0xff] %vm262, 0.0
          %273 = vst.msk [vmem:[#allocation10 + $0x10] sm:$0xff] %vm262, 0.0
          %274 = vst.msk [vmem:[#allocation10 + $0x18] sm:$0xff] %vm262, 0.0
        $region40: #{tpu_custom_call.1} parent=27 // pred_fallthru
          _
        %p275 = scmp.lt.s32.totalorder %s257, 2
        // Predicated region
        $region41: #{tpu_custom_call.1} parent=27 // pred_check
          %p276 = pneg %p275
        $region42: #{tpu_custom_call.1} parent=27 // pred_check_branch
          %278 = sbr.rel (%p276) target = $region44
        $region43: #{tpu_custom_call.1} parent=27 // pred_region
          %v279 = vld [vmem:[#allocation5] sm:$0xff]
          %v280 = vld [vmem:[#allocation5 + $0x8] sm:$0xff]
          %v281 = vld [vmem:[#allocation5 + $0x10] sm:$0xff]
          %v282 = vld [vmem:[#allocation5 + $0x18] sm:$0xff]
          %v283 = vld [vmem:[%s228] sm:$0xff]
          %v285 = vcombine.high %v283, %v283
          %vm286 = vcmask 31744
          %v288 = vsel %vm286, %v279, 0
          %v291 = vsel %vm286, %v280, 0
          %v294 = vsel %vm286, %v281, 0
          %v297 = vsel %vm286, %v282, 0
          %vm299 = vcmask 1043456
          %v300 = vsel %vm299, %v283, 0
          %v302 = vsel %vm299, %v285, 0
          %304 = vmatprep.subr.mxu0 %v302
          %305 = vmatpush1.msra.mxu0 %v300
          %306 = vmatprep.subr.mxu0 0.0
          %307 = vmatpush1.msra.mxu0 0.0
          %308 = vmatprep.subr.mxu0 0.0
          %309 = vmatpush1.msra.mxu0 0.0
          %310 = vmatprep.subr.mxu0 0.0
          %311 = vmatpush1.msra.mxu0 0.0
          %312 = vmatprep.subr.mxu0 0.0
          %313 = vmatpush1.msra.mxu0 0.0
          %314 = vmatprep.subr.mxu0 0.0
          %315 = vmatpush1.msra.mxu0 0.0
          %316 = vmatprep.subr.mxu0 0.0
          %317 = vmatpush1.msra.mxu0 0.0
          %318 = vmatprep.subr.mxu0 0.0
          %319 = vmatpush1.msra.mxu0 0.0
          %320 = vmatprep.subr.mxu0 0.0
          %321 = vmatpush1.msra.mxu0 0.0
          %322 = vmatprep.subr.mxu0 0.0
          %323 = vmatpush1.msra.mxu0 0.0
          %324 = vmatprep.subr.mxu0 0.0
          %325 = vmatpush1.msra.mxu0 0.0
          %326 = vmatprep.subr.mxu0 0.0
          %327 = vmatpush1.msra.mxu0 0.0
          %328 = vmatprep.subr.mxu0 0.0
          %329 = vmatpush1.msra.mxu0 0.0
          %330 = vmatprep.subr.mxu0 0.0
          %331 = vmatpush1.msra.mxu0 0.0
          %332 = vmatprep.subr.mxu0 0.0
          %333 = vmatpush1.msra.mxu0 0.0
          %334 = vmatprep.subr.mxu0 0.0
          %335 = vmatpush1.msra.mxu0 0.0
          %336 = vmatprep.subr.mxu0 0.0
          %337 = vmatpush1.msra.mxu0 0.0
          %338 = vmatprep.subr.mxu0 0.0
          %339 = vmatpush1.msra.mxu0 0.0
          %340 = vmatprep.subr.mxu0 0.0
          %341 = vmatpush1.msra.mxu0 0.0
          %342 = vmatprep.subr.mxu0 0.0
          %343 = vmatpush1.msra.mxu0 0.0
          %344 = vmatprep.subr.mxu0 0.0
          %345 = vmatpush1.msra.mxu0 0.0
          %346 = vmatprep.subr.mxu0 0.0
          %347 = vmatpush1.msra.mxu0 0.0
          %348 = vmatprep.subr.mxu0 0.0
          %349 = vmatpush1.msra.mxu0 0.0
          %350 = vmatprep.subr.mxu0 0.0
          %351 = vmatpush1.msra.mxu0 0.0
          %352 = vmatprep.subr.mxu0 0.0
          %353 = vmatpush1.msra.mxu0 0.0
          %354 = vmatprep.subr.mxu0 0.0
          %355 = vmatpush1.msra.mxu0 0.0
          %356 = vmatprep.subr.mxu0 0.0
          %357 = vmatpush1.msra.mxu0 0.0
          %358 = vmatprep.subr.mxu0 0.0
          %359 = vmatpush1.msra.mxu0 0.0
          %360 = vmatprep.subr.mxu0 0.0
          %361 = vmatpush1.msra.mxu0 0.0
          %362 = vmatprep.subr.mxu0 0.0
          %363 = vmatpush1.msra.mxu0 0.0
          %364 = vmatprep.subr.mxu0 0.0
          %365 = vmatpush1.msra.mxu0 0.0
          %366 = vmatprep.subr.mxu0 0.0
          %367 = vmatpush1.msra.mxu0 0.0
          %368 = vmatprep.mubr.f32.mxu0 0.0
          %369 = vmatmul.mubr.f32.gmra.mrb[0].mxu0 %v288
          %v370 = vpop.f32.mrb[0].mxu0
          %v371 = vadd.f32 0.0, %v370
          %v372 = vpop.f32.mrb[0].mxu0
          %v373 = vadd.f32 0.0, %v372
          %374 = vmatprep.mubr.f32.mxu0 0.0
          %375 = vmatmul.mubr.f32.gmra.mrb[0].mxu0 %v291
          %v376 = vpop.f32.mrb[0].mxu0
          %v377 = vadd.f32 0.0, %v376
          %v378 = vpop.f32.mrb[0].mxu0
          %v379 = vadd.f32 0.0, %v378
          %380 = vmatprep.mubr.f32.mxu0 0.0
          %381 = vmatmul.mubr.f32.gmra.mrb[0].mxu0 %v294
          %v382 = vpop.f32.mrb[0].mxu0
          %v383 = vadd.f32 0.0, %v382
          %v384 = vpop.f32.mrb[0].mxu0
          %v385 = vadd.f32 0.0, %v384
          %386 = vmatprep.mubr.f32.mxu0 0.0
          %387 = vmatmul.mubr.f32.gmra.mrb[0].mxu0 %v297
          %v388 = vpop.f32.mrb[0].mxu0
          %v389 = vadd.f32 0.0, %v388
          %v390 = vpop.f32.mrb[0].mxu0
          %v391 = vadd.f32 0.0, %v390
          %392 = vdwg.mxu0
          // Predicated region
          $region45: #{tpu_custom_call.1} parent=43 // pred_check
            %p393 = pneg %p258
          $region46: #{tpu_custom_call.1} parent=43 // pred_check_branch
            %395 = sbr.rel (%p393) target = $region48
          $region47: #{tpu_custom_call.1} parent=43 // pred_region
            %v396 = vadd.f32 %v371, %v373
            %397 = vadd.xlane.f32.xlu0 %v396
            %v398 = vpop.xlane.xlu0 %397
            %v399 = vadd.f32 %v377, %v379
            %400 = vadd.xlane.f32.xlu0 %v399
            %v401 = vpop.xlane.xlu0 %400
            %v402 = vadd.f32 %v383, %v385
            %403 = vadd.xlane.f32.xlu0 %v402
            %v404 = vpop.xlane.xlu0 %403
            %v405 = vadd.f32 %v389, %v391
            %406 = vadd.xlane.f32.xlu0 %v405
            %v407 = vpop.xlane.xlu0 %406
            %v408 = vrcp.pop 256.0
            %v409 = vmul.f32 %v398, %v408
            %v410 = vmul.f32 %v401, %v408
            %v411 = vmul.f32 %v404, %v408
            %v412 = vmul.f32 %v407, %v408
            %vm413 = vcmask 7168
            %414 = vst.msk [vmem:[#allocation7] sm:$0xff] %vm413, %v409
            %415 = vst.msk [vmem:[#allocation7 + $0x8] sm:$0xff] %vm413, %v410
            %416 = vst.msk [vmem:[#allocation7 + $0x10] sm:$0xff] %vm413, %v411
            %417 = vst.msk [vmem:[#allocation7 + $0x18] sm:$0xff] %vm413, %v412
          $region48: #{tpu_custom_call.1} parent=43 // pred_fallthru
            _
          %v418 = vld [vmem:[#allocation7] sm:$0xff]
          %v419 = vld [vmem:[#allocation7 + $0x8] sm:$0xff]
          %v420 = vld [vmem:[#allocation7 + $0x10] sm:$0xff]
          %v421 = vld [vmem:[#allocation7 + $0x18] sm:$0xff]
          %423 = vset.pattern.permute.xlu0 0
          %424 = vperm.xlu0 %423, %v418
          %v425 = vpop.permute.xlu0 %424
          %428 = vset.pattern.permute.xlu0 0
          %429 = vperm.xlu0 %428, %v419
          %v430 = vpop.permute.xlu0 %429
          %433 = vset.pattern.permute.xlu0 0
          %434 = vperm.xlu0 %433, %v420
          %v435 = vpop.permute.xlu0 %434
          %438 = vset.pattern.permute.xlu0 0
          %439 = vperm.xlu0 %438, %v421
          %v440 = vpop.permute.xlu0 %439
          %v442 = vsub.f32 %v371, %v425
          %v443 = vsub.f32 %v373, %v425
          %v444 = vsub.f32 %v377, %v430
          %v445 = vsub.f32 %v379, %v430
          %v446 = vsub.f32 %v383, %v435
          %v447 = vsub.f32 %v385, %v435
          %v448 = vsub.f32 %v389, %v440
          %v449 = vsub.f32 %v391, %v440
          %v450 = vld [vmem:[#allocation8] sm:$0xff]
          %v451 = vld [vmem:[#allocation8 + $0x8] sm:$0xff]
          %v452 = vld [vmem:[#allocation8 + $0x10] sm:$0xff]
          %v453 = vld [vmem:[#allocation8 + $0x18] sm:$0xff]
          %v454 = vadd.f32 %v442, %v443
          %455 = vadd.xlane.f32.xlu0 %v454
          %v456 = vpop.xlane.xlu0 %455
          %v457 = vadd.f32 %v444, %v445
          %458 = vadd.xlane.f32.xlu0 %v457
          %v459 = vpop.xlane.xlu0 %458
          %v460 = vadd.f32 %v446, %v447
          %461 = vadd.xlane.f32.xlu0 %v460
          %v462 = vpop.xlane.xlu0 %461
          %v463 = vadd.f32 %v448, %v449
          %464 = vadd.xlane.f32.xlu0 %v463
          %v465 = vpop.xlane.xlu0 %464
          %v466 = vadd.f32 %v450, %v456
          %v467 = vadd.f32 %v451, %v459
          %v468 = vadd.f32 %v452, %v462
          %v469 = vadd.f32 %v453, %v465
          %vm470 = vcmask 7168
          %471 = vst.msk [vmem:[#allocation8] sm:$0xff] %vm470, %v466
          %472 = vst.msk [vmem:[#allocation8 + $0x8] sm:$0xff] %vm470, %v467
          %473 = vst.msk [vmem:[#allocation8 + $0x10] sm:$0xff] %vm470, %v468
          %474 = vst.msk [vmem:[#allocation8 + $0x18] sm:$0xff] %vm470, %v469
          %v475 = vld [vmem:[#allocation10] sm:$0xff]
          %v476 = vld [vmem:[#allocation10 + $0x8] sm:$0xff]
          %v477 = vld [vmem:[#allocation10 + $0x10] sm:$0xff]
          %v478 = vld [vmem:[#allocation10 + $0x18] sm:$0xff]
          %v479 = vmul.f32 %v442, %v442
          %v480 = vmul.f32 %v443, %v443
          %v481 = vmul.f32 %v444, %v444
          %v482 = vmul.f32 %v445, %v445
          %v483 = vmul.f32 %v446, %v446
          %v484 = vmul.f32 %v447, %v447
          %v485 = vmul.f32 %v448, %v448
          %v486 = vmul.f32 %v449, %v449
          %v487 = vadd.f32 %v479, %v480
          %488 = vadd.xlane.f32.xlu0 %v487
          %v489 = vpop.xlane.xlu0 %488
          %v490 = vadd.f32 %v481, %v482
          %491 = vadd.xlane.f32.xlu0 %v490
          %v492 = vpop.xlane.xlu0 %491
          %v493 = vadd.f32 %v483, %v484
          %494 = vadd.xlane.f32.xlu0 %v493
          %v495 = vpop.xlane.xlu0 %494
          %v496 = vadd.f32 %v485, %v486
          %497 = vadd.xlane.f32.xlu0 %v496
          %v498 = vpop.xlane.xlu0 %497
          %v499 = vadd.f32 %v475, %v489
          %v500 = vadd.f32 %v476, %v492
          %v501 = vadd.f32 %v477, %v495
          %v502 = vadd.f32 %v478, %v498
          %503 = vst.msk [vmem:[#allocation10] sm:$0xff] %vm470, %v499
          %504 = vst.msk [vmem:[#allocation10 + $0x8] sm:$0xff] %vm470, %v500
          %505 = vst.msk [vmem:[#allocation10 + $0x10] sm:$0xff] %vm470, %v501
          %506 = vst.msk [vmem:[#allocation10 + $0x18] sm:$0xff] %vm470, %v502
        $region44: #{tpu_custom_call.1} parent=27 // pred_fallthru
          _
        // Predicated region
        $region49: #{tpu_custom_call.1} parent=27 // pred_check
          %p507 = pneg %p107
        $region50: #{tpu_custom_call.1} parent=27 // pred_check_branch
          %509 = sbr.rel (%p507) target = $region52
        $region51: #{tpu_custom_call.1} parent=27 // pred_region
          %s511 = ssub.s32 512, 512
          %512 = vsyncadd [#allocation4], %s511
          %s513 = smul.addr %s26, 4
          %s514 = smul.addr %s513, 128
          %s515 = scalar_lea.hbm %s2, %s514
          %s516 = sshll.u32 [#allocation7], 4
          %s517 = int_to_ptr.vmem [resolvable:$true] %s516
          %522 = dma.vmem_to_hbm [thread:$0]  %s517, 512, %s515, [#allocation4], 128, 128, 8
        $region52: #{tpu_custom_call.1} parent=27 // pred_fallthru
          _
        // Predicated region
        $region53: #{tpu_custom_call.1} parent=27 // pred_check
          %p523 = pneg %p133
        $region54: #{tpu_custom_call.1} parent=27 // pred_check_branch
          %525 = sbr.rel (%p523) target = $region56
        $region55: #{tpu_custom_call.1} parent=27 // pred_region
          %s527 = ssub.s32 512, 512
          %528 = vsyncadd [#allocation9], %s527
          %s529 = smul.addr %s26, 4
          %s530 = smul.addr %s529, 128
          %s531 = scalar_lea.hbm %s3, %s530
          %s532 = sshll.u32 [#allocation8], 4
          %s533 = int_to_ptr.vmem [resolvable:$true] %s532
          %538 = dma.vmem_to_hbm [thread:$0]  %s533, 512, %s531, [#allocation9], 128, 128, 8
        $region56: #{tpu_custom_call.1} parent=27 // pred_fallthru
          _
        // Predicated region
        $region57: #{tpu_custom_call.1} parent=27 // pred_check
          %p539 = pneg %p159
        $region58: #{tpu_custom_call.1} parent=27 // pred_check_branch
          %541 = sbr.rel (%p539) target = $region60
        $region59: #{tpu_custom_call.1} parent=27 // pred_region
          %s543 = ssub.s32 512, 512
          %544 = vsyncadd [#allocation9], %s543
          %s545 = smul.addr %s26, 4
          %s546 = smul.addr %s545, 128
          %s547 = scalar_lea.hbm %s4, %s546
          %s548 = sshll.u32 [#allocation10], 4
          %s549 = int_to_ptr.vmem [resolvable:$true] %s548
          %554 = dma.vmem_to_hbm [thread:$0]  %s549, 512, %s547, [#allocation9], 128, 128, 8
        $region60: #{tpu_custom_call.1} parent=27 // pred_fallthru
          _
        // Predicated region
        $region61: #{tpu_custom_call.1} parent=27 // pred_check
          %p555 = pneg %p107
        $region62: #{tpu_custom_call.1} parent=27 // pred_check_branch
          %557 = sbr.rel (%p555) target = $region64
        $region63: #{tpu_custom_call.1} parent=27 // pred_region
          %558 = dma.done [#allocation4], 512
        $region64: #{tpu_custom_call.1} parent=27 // pred_fallthru
          _
        // Predicated region
        $region65: #{tpu_custom_call.1} parent=27 // pred_check
          %p559 = pneg %p133
        $region66: #{tpu_custom_call.1} parent=27 // pred_check_branch
          %561 = sbr.rel (%p559) target = $region68
        $region67: #{tpu_custom_call.1} parent=27 // pred_region
          %562 = dma.done [#allocation9], 512
        $region68: #{tpu_custom_call.1} parent=27 // pred_fallthru
          _
        // Predicated region
        $region69: #{tpu_custom_call.1} parent=27 // pred_check
          %p563 = pneg %p159
        $region70: #{tpu_custom_call.1} parent=27 // pred_check_branch
          %565 = sbr.rel (%p563) target = $region72
        $region71: #{tpu_custom_call.1} parent=27 // pred_region
          %566 = dma.done [#allocation9], 512
        $region72: #{tpu_custom_call.1} parent=27 // pred_fallthru
          _
      $region28: #{tpu_custom_call.1} parent=5 // pred_fallthru
        _
      %p567 = scmp.le.s32.totalorder 2, %s17
      // Predicated region
      $region73: #{tpu_custom_call.1} parent=5 // pred_check
        %p568 = pneg %p567
      $region74: #{tpu_custom_call.1} parent=5 // pred_check_branch
        %570 = sbr.rel (%p568) target = $region76
      $region75: #{tpu_custom_call.1} parent=5 // pred_region
        %s571 = ssub.s32 %s17, 2
      $region76: #{tpu_custom_call.1} parent=5 // pred_fallthru
        _
    $region6: #{tpu_custom_call.1} parent=1 // loop_footer
      %s21 = sadd.s32 1, %s17
    $region7: #{tpu_custom_call.1} parent=1 // loop_footer_branch
      %16 = sbr.rel target = $region3
    $region8: #{tpu_custom_call.1} parent=1 // loop_exit
      _
    %572 = vsyncpa [#allocation3], 1
    %s573 = scalar_lea.sflag [#allocation3], 1
    %574 = vsyncpa %s573, 1
    %575 = vsyncpa [#allocation6], 1
    %576 = vsyncpa [#allocation4], 1
    %s577 = scalar_lea.sflag [#allocation4], 1
    %578 = vsyncpa %s577, 1
    %579 = vsyncpa [#allocation9], 1

</llo_original>
